<compile_context>
chip_gen: v6e
topology: v6e:2x2x1
jax: 0.10.0
libtpu: 0.0.40
codegen_flags: <defaults>
</compile_context>

<pallas_src>
import jax
import jax.numpy as jnp
import numpy as np
from jax.experimental import pallas as pl
from jax.experimental.pallas import tpu as pltpu


def _se_kernel(x_ref, w1_ref, alpha_ref, w2_ref, o_ref):
    # x_ref:     (1, C, TP)  tile of pixels for one batch element (pixels on lanes)
    # w1_ref:    (Cr, C)     conv1 weight (1x1 conv == matmul), resident
    # alpha_ref: (Cr, 1)     per-channel PReLU slope
    # w2_ref:    (C, Cr)     conv2 weight, resident
    # o_ref:     (1, C, TP)  gated output tile
    x = x_ref[0].astype(jnp.float32)                                  # (C, TP)
    h = jnp.dot(w1_ref[...], x, preferred_element_type=jnp.float32)   # (Cr, TP)
    alpha = alpha_ref[...]                                            # (Cr, 1) -> bcast over lanes
    h = jnp.where(h >= 0, h, alpha * h)                               # PReLU (per-channel)
    s = jnp.dot(w2_ref[...], h, preferred_element_type=jnp.float32)   # (C, TP)
    gate = jax.nn.sigmoid(s)
    o_ref[0] = (x * gate).astype(o_ref.dtype)


def se_layer_pallas(x_nchw, w1, alpha, w2, *, tile_pix=512):
    """SELayer forward.

    x_nchw: (B, C, H, W)   input
    w1:     (Cr, C)        conv1 weight (1x1, squeezed), Cr = C // reduct
    alpha:  (Cr,)          PReLU slopes
    w2:     (C, Cr)        conv2 weight (1x1, squeezed)
    returns (B, C, H, W)
    """
    B, C, H, W = x_nchw.shape
    Cr = w1.shape[0]
    P = H * W

    # Free reshapes only: no NCHW<->NHWC transposes through HBM.
    x3 = x_nchw.reshape(B, C, P)
    alpha2d = alpha.reshape(Cr, 1)

    # Pick a lane-dense pixel tile (multiple of 128), capped so that
    # (in + out) x double-buffer fits comfortably even in v7x's scoped VMEM.
    itemsize = jnp.dtype(x_nchw.dtype).itemsize
    vmem_budget = 24 * 1024 * 1024                     # conservative for v7x (64 MiB phys)
    bytes_per_px = itemsize * C * 2 * 2                # (in + out) * double-buffer
    max_tp = max(128, (vmem_budget // bytes_per_px) // 128 * 128)
    tp = min(tile_pix, max_tp)
    if P <= tp:
        tp = P                                         # full extent is always a legal block
    grid = (B, pl.cdiv(P, tp))                         # no divisibility requirement

    out3 = pl.pallas_call(
        _se_kernel,
        out_shape=jax.ShapeDtypeStruct((B, C, P), x_nchw.dtype),
        grid_spec=pltpu.PrefetchScalarGridSpec(
            num_scalar_prefetch=0,
            grid=grid,
            in_specs=[
                pl.BlockSpec((1, C, tp), lambda b, p: (b, 0, p)),  # x tile (pixels on lanes)
                pl.BlockSpec((Cr, C), lambda b, p: (0, 0)),        # w1 (resident)
                pl.BlockSpec((Cr, 1), lambda b, p: (0, 0)),        # PReLU alpha
                pl.BlockSpec((C, Cr), lambda b, p: (0, 0)),        # w2 (resident)
            ],
            out_specs=pl.BlockSpec((1, C, tp), lambda b, p: (b, 0, p)),
        ),
        compiler_params=pltpu.CompilerParams(
            dimension_semantics=("parallel", "parallel")),
    )(x3, w1, alpha2d, w2)

    return out3.reshape(B, C, H, W)


def _reference(x_nchw, w1, alpha, w2):
    # Pure-JAX reference matching PyTorch semantics (1x1 convs, no bias), NCHW.
    h = jnp.einsum("oc,bchw->bohw", w1, x_nchw)
    h = jnp.where(h >= 0, h, alpha.reshape(1, -1, 1, 1) * h)          # PReLU
    s = jnp.einsum("or,brhw->bohw", w2, h)
    gate = jax.nn.sigmoid(s)
    return x_nchw * gate


if __name__ == "__main__":
    B, C, H, W = 2, 8, 16, 16
    reduct = 4
    Cr = C // reduct

    key = jax.random.PRNGKey(0)
    kx, k1, k2 = jax.random.split(key, 3)

    x = jax.random.normal(kx, (B, C, H, W), dtype=jnp.float32)
    # Shapes from nn.Conv2d(C, Cr, 1, bias=False) / nn.Conv2d(Cr, C, 1, bias=False).
    w1 = jax.random.normal(k1, (Cr, C), dtype=jnp.float32) * 0.1
    w2 = jax.random.normal(k2, (C, Cr), dtype=jnp.float32) * 0.1
    alpha = jnp.full((Cr,), 0.25, dtype=jnp.float32)                  # PReLU default init

    out = se_layer_pallas(x, w1, alpha, w2)
    out = jax.block_until_ready(out)

    ref = _reference(x, w1, alpha, w2)
    np.testing.assert_allclose(np.asarray(out), np.asarray(ref), rtol=1e-5, atol=1e-5)

    print("KERNEL_OK")
</pallas_src>

<mosaic_0001>
module attributes {stable_mosaic.version = 11 : i64} {
  func.func @_se_kernel(%arg0: i32, %arg1: i32, %arg2: memref<1x8x256xf32, #tpu.memory_space<vmem>>, %arg3: memref<2x8xf32, #tpu.memory_space<vmem>>, %arg4: memref<2x1xf32, #tpu.memory_space<vmem>>, %arg5: memref<8x2xf32, #tpu.memory_space<vmem>>, %arg6: memref<1x8x256xf32, #tpu.memory_space<vmem>>) attributes {dimension_semantics = [#tpu.dimension_semantics<parallel>, #tpu.dimension_semantics<parallel>], iteration_bounds = array<i64: 2, 1>, scalar_prefetch = 0 : i64, scratch_operands = 0 : i64, tpu.core_type = #tpu.core_type<tc>, window_params = [{transform_indices = @transform_0, window_bounds = array<i64: 1, 8, 256>}, {pipeline_mode = #tpu.pipeline_mode<synchronous>, transform_indices = @transform_1, window_bounds = array<i64: 2, 8>}, {pipeline_mode = #tpu.pipeline_mode<synchronous>, transform_indices = @transform_2, window_bounds = array<i64: 2, 1>}, {pipeline_mode = #tpu.pipeline_mode<synchronous>, transform_indices = @transform_3, window_bounds = array<i64: 8, 2>}, {transform_indices = @transform_4, window_bounds = array<i64: 1, 8, 256>}]} {
    %c0 = arith.constant 0 : index
    %c0_0 = arith.constant 0 : index
    %c0_1 = arith.constant 0 : index
    %0 = vector.load %arg2[%c0, %c0_0, %c0_1] : memref<1x8x256xf32, #tpu.memory_space<vmem>>, vector<1x8x256xf32>
    %1 = vector.shape_cast %0 : vector<1x8x256xf32> to vector<8x256xf32>
    %c0_2 = arith.constant 0 : index
    %c0_3 = arith.constant 0 : index
    %2 = vector.load %arg3[%c0_2, %c0_3] : memref<2x8xf32, #tpu.memory_space<vmem>>, vector<2x8xf32>
    %cst = arith.constant dense<0.000000e+00> : vector<2x256xf32>
    %3 = tpu.matmul %2, %1, %cst {dimension_numbers = #tpu.dot_dimension_numbers<[1], [0], [0], [1], [0, 0, 1, 1], [], []>} : vector<2x8xf32>, vector<8x256xf32>, vector<2x256xf32> -> vector<2x256xf32>
    %c0_4 = arith.constant 0 : index
    %c0_5 = arith.constant 0 : index
    %4 = vector.load %arg4[%c0_4, %c0_5] : memref<2x1xf32, #tpu.memory_space<vmem>>, vector<2x1xf32>
    %cst_6 = arith.constant 0.000000e+00 : f32
    %5 = vector.broadcast %cst_6 : f32 to vector<2x256xf32>
    %6 = arith.cmpf oge, %3, %5 : vector<2x256xf32>
    %7 = vector.broadcast %4 : vector<2x1xf32> to vector<2x256xf32>
    %8 = arith.mulf %7, %3 : vector<2x256xf32>
    %9 = arith.select %6, %3, %8 : vector<2x256xi1>, vector<2x256xf32>
    %c0_7 = arith.constant 0 : index
    %c0_8 = arith.constant 0 : index
    %10 = vector.load %arg5[%c0_7, %c0_8] : memref<8x2xf32, #tpu.memory_space<vmem>>, vector<8x2xf32>
    %cst_9 = arith.constant dense<0.000000e+00> : vector<8x256xf32>
    %11 = tpu.matmul %10, %9, %cst_9 {dimension_numbers = #tpu.dot_dimension_numbers<[1], [0], [0], [1], [0, 0, 1, 1], [], []>} : vector<8x2xf32>, vector<2x256xf32>, vector<8x256xf32> -> vector<8x256xf32>
    %12 = arith.negf %11 : vector<8x256xf32>
    %13 = math.exp %12 : vector<8x256xf32>
    %cst_10 = arith.constant 1.000000e+00 : f32
    %14 = vector.broadcast %cst_10 : f32 to vector<8x256xf32>
    %15 = arith.addf %14, %13 : vector<8x256xf32>
    %16 = arith.divf %14, %15 : vector<8x256xf32>
    %17 = arith.mulf %1, %16 : vector<8x256xf32>
    %c0_11 = arith.constant 0 : index
    %c0_12 = arith.constant 0 : index
    %c0_13 = arith.constant 0 : index
    %18 = vector.load %arg6[%c0_11, %c0_12, %c0_13] : memref<1x8x256xf32, #tpu.memory_space<vmem>>, vector<1x8x256xf32>
    %19 = vector.shape_cast %18 : vector<1x8x256xf32> to vector<8x256xf32>
    %20 = vector.shape_cast %17 : vector<8x256xf32> to vector<1x8x256xf32>
    tpu.vector_store %arg6[%c0_11, %c0_12, %c0_13], %20 {strides = array<i32>} : memref<1x8x256xf32, #tpu.memory_space<vmem>>, vector<1x8x256xf32>,
    return
  }
  func.func @transform_0(%arg0: i32, %arg1: i32) -> (i32, i32, i32) {
    %c0_i32 = arith.constant 0 : i32
    %c0_i32_0 = arith.constant 0 : i32
    return %arg0, %c0_i32, %arg1 : i32, i32, i32
  }
  func.func @transform_1(%arg0: i32, %arg1: i32) -> (i32, i32) {
    %c0_i32 = arith.constant 0 : i32
    %c0_i32_0 = arith.constant 0 : i32
    %c0_i32_1 = arith.constant 0 : i32
    return %c0_i32, %c0_i32_0 : i32, i32
  }
  func.func @transform_2(%arg0: i32, %arg1: i32) -> (i32, i32) {
    %c0_i32 = arith.constant 0 : i32
    %c0_i32_0 = arith.constant 0 : i32
    %c0_i32_1 = arith.constant 0 : i32
    return %c0_i32, %c0_i32_0 : i32, i32
  }
  func.func @transform_3(%arg0: i32, %arg1: i32) -> (i32, i32) {
    %c0_i32 = arith.constant 0 : i32
    %c0_i32_0 = arith.constant 0 : i32
    %c0_i32_1 = arith.constant 0 : i32
    return %c0_i32, %c0_i32_0 : i32, i32
  }
  func.func @transform_4(%arg0: i32, %arg1: i32) -> (i32, i32, i32) {
    %c0_i32 = arith.constant 0 : i32
    %c0_i32_0 = arith.constant 0 : i32
    return %arg0, %c0_i32, %arg1 : i32, i32, i32
  }
}

</mosaic_0001>

<llo_original>
// kernel: tpu_custom_call.1
$region0: #{tpu_custom_call.1}
  #allocation0 [shape = 'u32[]', space=smem, size = 0x4, offset = 0x4, fixed_abs, tag = 'smem constant byte address 0x4 - core index']
  #allocation1 [shape = 'u32[144,128]{1,0:T(1,128)}', space=vmem, size = 0x12000, scoped, tag = 'internal scratch']
  %s0 = inlined_call_operand.hbm [shape: f32[2,8,256], index: 0, kind: input, shape index: {}]
  %s1 = inlined_call_operand.vmem [shape: f32[2,8], index: 1, kind: input, shape index: {}]
  %s2 = inlined_call_operand.vmem [shape: f32[2,1], index: 2, kind: input, shape index: {}]
  %s3 = inlined_call_operand.vmem [shape: f32[8,2], index: 3, kind: input, shape index: {}]
  %s4 = inlined_call_operand.hbm [shape: f32[2,8,256], index: 4, kind: output, shape index: {}]
  %s5 = sld [smem:[#allocation0]]
  $region53: #{tpu_custom_call.1} parent=0
    _
  %s7 = ssub.s32 1, %s5
  %s8 = scalar_select 0, %s7, %s5
  $region1: #{tpu_custom_call.1} parent=0
    #allocation2 [shape = 'u8[16384]{0}', space=vmem, size = 0x4000, scoped, tag = 'input window, operand 0']
    #allocation3 [shape = 's32[2]{0}', space=sflag, size = 0x8, scoped, tag = 'scoped memory for tpu_custom_call.1']
    #allocation4 [shape = 's32[2]{0}', space=sflag, size = 0x8, scoped, tag = 'scoped memory for tpu_custom_call.1']
    #allocation5 [shape = 'u8[16384]{0}', space=vmem, size = 0x4000, scoped, tag = 'output window, operand 0']
    %9 = vsyncpa [#allocation3], 0
    %s10 = scalar_lea.sflag [#allocation3], 1
    %11 = vsyncpa %s10, 0
    %12 = vsyncpa [#allocation4], 0
    %s13 = scalar_lea.sflag [#allocation4], 1
    %14 = vsyncpa %s13, 0
    loop: start=0, step=1, limit=4
    $region2: #{tpu_custom_call.1} parent=1 // loop_pre_header
      _
    $region3: #{tpu_custom_call.1} parent=1 // loop_header
      %s16 = sphi 0, %s20
      %p17 = scmp.ge.s32.totalorder %s16, 4
      %s23 = sphi 0, %s35
      %s24 = sphi 0, %s31
      %s25 = sphi 0, %s23
      %s26 = sphi 0, %s24
      %s27 = sphi 0, %s25
      %s28 = sphi 0, %s26
      %s40 = sphi 0, %s42
      %s43 = sphi 0, %s40
      %s44 = sphi 0, %s43
      %s60 = sphi 0, %s44
      %s64 = sphi 0, %s64
      %s66 = sphi 0, %s64
      %s67 = sphi 0, %s66
      %s81 = sphi 0, %s67
      %s85 = sphi 0, %s85
      %s87 = sphi 0, %s85
      %s88 = sphi 0, %s87
      %s102 = sphi 0, %s88
      %s106 = sphi 0, %s106
      %s108 = sphi 0, %s106
      %s109 = sphi 0, %s108
      %s123 = sphi 0, %s109
      %s131 = sphi 0, %s133
      %s134 = sphi 0, %s131
      %s135 = sphi 0, %s134
      %s151 = sphi 0, %s135
    $region4: #{tpu_custom_call.1} parent=1 // loop_header_branch
      %19 = sbr.rel (%p17) target = $region8
    $region5: #{tpu_custom_call.1} parent=1 // loop_body
      %s21 = ssub.s32 %s16, 1
      %s22 = ssub.s32 %s16, 2
      %s29 = sadd.s32 1, %s24
      %p30 = scmp.ge.s32.totalorder %s29, 1
      %s31 = scalar_select %p30, 0, %s29
      %s32 = sadd.s32 1, %s23
      %s33 = scalar_select %p30, %s32, %s23
      %p34 = scmp.ge.s32.totalorder %s33, 2
      %s35 = scalar_select %p34, 0, %s33
      %s36 = ssub.s32 %s23, %s35
      %s37 = ssub.s32 %s24, %s31
      %s38 = sor.u32 %s36, %s37
      %p39 = scmp.eq.s32.totalorder %s38, 0
      %s41 = sadd.s32 %s40, 1
      %s42 = scalar_select %p39, %s40, %s41
      %p45 = pneg %p39
      %p46 = scmp.eq.s32.totalorder %s16, 1
      %p47 = por %p45, %p46
      %p48 = scmp.ne.s32.totalorder %s40, %s43
      %p49 = scmp.eq.s32.totalorder %s16, 0
      %p50 = por %p48, %p49
      %p51 = scmp.ne.s32.totalorder %s40, %s43
      %p52 = scmp.eq.s32.totalorder %s21, 1
      %p53 = por %p51, %p52
      %p54 = scmp.ne.s32.totalorder %s43, %s44
      %p55 = scmp.eq.s32.totalorder %s21, 0
      %p56 = por %p54, %p55
      %p57 = scmp.ne.s32.totalorder %s43, %s44
      %p58 = scmp.eq.s32.totalorder %s22, 1
      %p59 = por %p57, %p58
      %p61 = scmp.ne.s32.totalorder %s44, %s60
      %p62 = scmp.eq.s32.totalorder %s22, 0
      %p63 = por %p61, %p62
      %s65 = sadd.s32 %s64, 1
      %p68 = scmp.eq.s32.totalorder %s16, 1
      %p69 = scmp.ne.s32.totalorder %s64, %s66
      %p70 = scmp.eq.s32.totalorder %s16, 0
      %p71 = por %p69, %p70
      %p72 = scmp.ne.s32.totalorder %s64, %s66
      %p73 = scmp.eq.s32.totalorder %s21, 1
      %p74 = por %p72, %p73
      %p75 = scmp.ne.s32.totalorder %s66, %s67
      %p76 = scmp.eq.s32.totalorder %s21, 0
      %p77 = por %p75, %p76
      %p78 = scmp.ne.s32.totalorder %s66, %s67
      %p79 = scmp.eq.s32.totalorder %s22, 1
      %p80 = por %p78, %p79
      %p82 = scmp.ne.s32.totalorder %s67, %s81
      %p83 = scmp.eq.s32.totalorder %s22, 0
      %p84 = por %p82, %p83
      %s86 = sadd.s32 %s85, 1
      %p89 = scmp.eq.s32.totalorder %s16, 1
      %p90 = scmp.ne.s32.totalorder %s85, %s87
      %p91 = scmp.eq.s32.totalorder %s16, 0
      %p92 = por %p90, %p91
      %p93 = scmp.ne.s32.totalorder %s85, %s87
      %p94 = scmp.eq.s32.totalorder %s21, 1
      %p95 = por %p93, %p94
      %p96 = scmp.ne.s32.totalorder %s87, %s88
      %p97 = scmp.eq.s32.totalorder %s21, 0
      %p98 = por %p96, %p97
      %p99 = scmp.ne.s32.totalorder %s87, %s88
      %p100 = scmp.eq.s32.totalorder %s22, 1
      %p101 = por %p99, %p100
      %p103 = scmp.ne.s32.totalorder %s88, %s102
      %p104 = scmp.eq.s32.totalorder %s22, 0
      %p105 = por %p103, %p104
      %s107 = sadd.s32 %s106, 1
      %p110 = scmp.eq.s32.totalorder %s16, 1
      %p111 = scmp.ne.s32.totalorder %s106, %s108
      %p112 = scmp.eq.s32.totalorder %s16, 0
      %p113 = por %p111, %p112
      %p114 = scmp.ne.s32.totalorder %s106, %s108
      %p115 = scmp.eq.s32.totalorder %s21, 1
      %p116 = por %p114, %p115
      %p117 = scmp.ne.s32.totalorder %s108, %s109
      %p118 = scmp.eq.s32.totalorder %s21, 0
      %p119 = por %p117, %p118
      %p120 = scmp.ne.s32.totalorder %s108, %s109
      %p121 = scmp.eq.s32.totalorder %s22, 1
      %p122 = por %p120, %p121
      %p124 = scmp.ne.s32.totalorder %s109, %s123
      %p125 = scmp.eq.s32.totalorder %s22, 0
      %p126 = por %p124, %p125
      %s127 = ssub.s32 %s23, %s35
      %s128 = ssub.s32 %s24, %s31
      %s129 = sor.u32 %s127, %s128
      %p130 = scmp.eq.s32.totalorder %s129, 0
      %s132 = sadd.s32 %s131, 1
      %s133 = scalar_select %p130, %s131, %s132
      %p136 = pneg %p130
      %p137 = scmp.eq.s32.totalorder %s16, 1
      %p138 = por %p136, %p137
      %p139 = scmp.ne.s32.totalorder %s131, %s134
      %p140 = scmp.eq.s32.totalorder %s16, 0
      %p141 = por %p139, %p140
      %p142 = scmp.ne.s32.totalorder %s131, %s134
      %p143 = scmp.eq.s32.totalorder %s21, 1
      %p144 = por %p142, %p143
      %p145 = scmp.ne.s32.totalorder %s134, %s135
      %p146 = scmp.eq.s32.totalorder %s21, 0
      %p147 = por %p145, %p146
      %p148 = scmp.ne.s32.totalorder %s134, %s135
      %p149 = scmp.eq.s32.totalorder %s22, 1
      %p150 = por %p148, %p149
      %p152 = scmp.ne.s32.totalorder %s135, %s151
      %p153 = scmp.eq.s32.totalorder %s22, 0
      %p154 = por %p152, %p153
      %p155 = scmp.le.s32.totalorder 1, %s16
      %p156 = scmp.lt.s32.totalorder %s16, 3
      %p157 = pnand %p155, %p156
      %p158 = pneg %p157
      // Predicated region
      $region9: #{tpu_custom_call.1} parent=5 // pred_check
        _
      $region10: #{tpu_custom_call.1} parent=5 // pred_check_branch
        %160 = sbr.rel (%p157) target = $region12
      $region11: #{tpu_custom_call.1} parent=5 // pred_region
        %s161 = ssub.s32 %s16, 1
        // Predicated region
        $region13: #{tpu_custom_call.1} parent=11 // pred_check
          %p162 = pneg %p77
        $region14: #{tpu_custom_call.1} parent=11 // pred_check_branch
          %164 = sbr.rel (%p162) target = $region16
        $region15: #{tpu_custom_call.1} parent=11 // pred_region
          _
        $region16: #{tpu_custom_call.1} parent=11 // pred_fallthru
          _
        // Predicated region
        $region17: #{tpu_custom_call.1} parent=11 // pred_check
          %p165 = pneg %p98
        $region18: #{tpu_custom_call.1} parent=11 // pred_check_branch
          %167 = sbr.rel (%p165) target = $region20
        $region19: #{tpu_custom_call.1} parent=11 // pred_region
          _
        $region20: #{tpu_custom_call.1} parent=11 // pred_fallthru
          _
        // Predicated region
        $region21: #{tpu_custom_call.1} parent=11 // pred_check
          %p168 = pneg %p119
        $region22: #{tpu_custom_call.1} parent=11 // pred_check_branch
          %170 = sbr.rel (%p168) target = $region24
        $region23: #{tpu_custom_call.1} parent=11 // pred_region
          _
        $region24: #{tpu_custom_call.1} parent=11 // pred_fallthru
          _
      $region12: #{tpu_custom_call.1} parent=5 // pred_fallthru
        _
      %p171 = scmp.lt.s32.totalorder %s16, 2
      // Predicated region
      $region25: #{tpu_custom_call.1} parent=5 // pred_check
        %p172 = pneg %p171
      $region26: #{tpu_custom_call.1} parent=5 // pred_check_branch
        %174 = sbr.rel (%p172) target = $region28
      $region27: #{tpu_custom_call.1} parent=5 // pred_region
        // Predicated region
        $region29: #{tpu_custom_call.1} parent=27 // pred_check
          %p175 = pneg %p50
        $region30: #{tpu_custom_call.1} parent=27 // pred_check_branch
          %177 = sbr.rel (%p175) target = $region32
        $region31: #{tpu_custom_call.1} parent=27 // pred_region
          %s178 = sand.u32 %s40, 1
          %s179 = scalar_lea.sflag [#allocation3], %s178
          %s180 = sand.u32 %s40, 1
          %s181 = smul.addr %s180, 16
          %s182 = scalar_lea.vmem [#allocation2], %s181
          %s183 = smul.u32 2, %s24
          %s185 = ssub.s32 256, 256
          %186 = vsyncadd %s179, %s185
          %s187 = smul.addr %s23, 2
          %s188 = sadd.s32 %s183, %s187
          %s189 = smul.addr %s188, 128
          %s190 = scalar_lea.hbm %s0, %s189
          %s192 = sshll.u32 %s182, 4
          %s193 = int_to_ptr.vmem [resolvable:$true] %s192
          %195 = dma.hbm_to_vmem [thread:$0]  %s190, 256, %s193, %s179
        $region32: #{tpu_custom_call.1} parent=27 // pred_fallthru
          _
      $region28: #{tpu_custom_call.1} parent=5 // pred_fallthru
        _
      %p196 = scmp.le.s32.totalorder 1, %s16
      %p197 = scmp.lt.s32.totalorder %s16, 3
      %p198 = pnand %p196, %p197
      %p199 = pneg %p198
      // Predicated region
      $region33: #{tpu_custom_call.1} parent=5 // pred_check
        _
      $region34: #{tpu_custom_call.1} parent=5 // pred_check_branch
        %201 = sbr.rel (%p198) target = $region36
      $region35: #{tpu_custom_call.1} parent=5 // pred_region
        %s202 = ssub.s32 %s16, 1
        %s203 = sand.u32 %s43, 1
        %s204 = scalar_lea.sflag [#allocation3], %s203
        %s205 = sand.u32 %s43, 1
        %s206 = smul.addr %s205, 16
        %s207 = scalar_lea.vmem [#allocation2], %s206
        // Predicated region
        $region37: #{tpu_custom_call.1} parent=35 // pred_check
          %p208 = pneg %p56
        $region38: #{tpu_custom_call.1} parent=35 // pred_check_branch
          %210 = sbr.rel (%p208) target = $region40
        $region39: #{tpu_custom_call.1} parent=35 // pred_region
          %211 = dma.done %s204, 256
        $region40: #{tpu_custom_call.1} parent=35 // pred_fallthru
          _
        %s212 = sand.u32 %s43, 1
        %s213 = scalar_lea.sflag [#allocation3], %s212
        %s214 = sand.u32 %s43, 1
        %s215 = smul.addr %s214, 16
        %s216 = scalar_lea.vmem [#allocation2], %s215
        %p217 = pneg %p56
        %p218 = pneg %p53
        %p219 = pneg %p77
        %p220 = pneg %p74
        %p221 = pneg %p98
        %p222 = pneg %p95
        %p223 = pneg %p119
        %p224 = pneg %p116
        %p225 = pneg %p147
        %p226 = pneg %p144
        %s227 = sand.u32 %s134, 1
        %s228 = scalar_lea.sflag [#allocation4], %s227
        %s229 = sand.u32 %s134, 1
        %s230 = smul.addr %s229, 16
        %s231 = scalar_lea.vmem [#allocation5], %s230
        %s232 = smul.u32 2, %s26
        %s233 = smul.u32 2, %s26
        %v234 = vld [vmem:[%s207] sm:$0xff]
        %v235 = vld [vmem:[%s207 + $0x8] sm:$0xff]
        %v236 = vld [vmem:[%s1] sm:$0x3]
        %vm237 = vcmask 64512
        %v239 = vsel %vm237, %v236, 0
        %241 = vmatprep.subr.mxu0 0.0
        %242 = vmatpush1.msra.mxu0 0.0
        %243 = vmatprep.subr.mxu0 0.0
        %244 = vmatpush1.msra.mxu0 0.0
        %245 = vmatprep.subr.mxu0 0.0
        %246 = vmatpush1.msra.mxu0 0.0
        %247 = vmatprep.subr.mxu0 0.0
        %248 = vmatpush1.msra.mxu0 0.0
        %249 = vmatprep.subr.mxu0 0.0
        %250 = vmatpush1.msra.mxu0 0.0
        %251 = vmatprep.subr.mxu0 0.0
        %252 = vmatpush1.msra.mxu0 0.0
        %253 = vmatprep.subr.mxu0 0.0
        %254 = vmatpush1.msra.mxu0 0.0
        %255 = vmatprep.subr.mxu0 0.0
        %256 = vmatpush1.msra.mxu0 0.0
        %257 = vmatprep.subr.mxu0 0.0
        %258 = vmatpush1.msra.mxu0 0.0
        %259 = vmatprep.subr.mxu0 0.0
        %260 = vmatpush1.msra.mxu0 0.0
        %261 = vmatprep.subr.mxu0 0.0
        %262 = vmatpush1.msra.mxu0 0.0
        %263 = vmatprep.subr.mxu0 0.0
        %264 = vmatpush1.msra.mxu0 0.0
        %265 = vmatprep.subr.mxu0 0.0
        %266 = vmatpush1.msra.mxu0 0.0
        %267 = vmatprep.subr.mxu0 0.0
        %268 = vmatpush1.msra.mxu0 0.0
        %269 = vmatprep.subr.mxu0 0.0
        %270 = vmatpush1.msra.mxu0 0.0
        %271 = vmatprep.subr.mxu0 %v235
        %272 = vmatpush1.msra.mxu0 %v234
        %273 = vmatprep.subr.mxu0 0.0
        %274 = vmatpush2.msra.mxu0 0.0
        %275 = vmatprep.subr.mxu0 0.0
        %276 = vmatpush2.msra.mxu0 0.0
        %277 = vmatprep.subr.mxu0 0.0
        %278 = vmatpush2.msra.mxu0 0.0
        %279 = vmatprep.subr.mxu0 0.0
        %280 = vmatpush2.msra.mxu0 0.0
        %281 = vmatprep.subr.mxu0 0.0
        %282 = vmatpush2.msra.mxu0 0.0
        %283 = vmatprep.subr.mxu0 0.0
        %284 = vmatpush2.msra.mxu0 0.0
        %285 = vmatprep.subr.mxu0 0.0
        %286 = vmatpush2.msra.mxu0 0.0
        %287 = vmatprep.subr.mxu0 0.0
        %288 = vmatpush2.msra.mxu0 0.0
        %289 = vmatprep.subr.mxu0 0.0
        %290 = vmatpush2.msra.mxu0 0.0
        %291 = vmatprep.subr.mxu0 0.0
        %292 = vmatpush2.msra.mxu0 0.0
        %293 = vmatprep.subr.mxu0 0.0
        %294 = vmatpush2.msra.mxu0 0.0
        %295 = vmatprep.subr.mxu0 0.0
        %296 = vmatpush2.msra.mxu0 0.0
        %297 = vmatprep.subr.mxu0 0.0
        %298 = vmatpush2.msra.mxu0 0.0
        %299 = vmatprep.subr.mxu0 0.0
        %300 = vmatpush2.msra.mxu0 0.0
        %301 = vmatprep.subr.mxu0 0.0
        %302 = vmatpush2.msra.mxu0 0.0
        %303 = vmatprep.subr.mxu0 0.0
        %304 = vmatpush2.msra.mxu0 0.0
        %305 = vmatprep.mubr.f32.mxu0 0.0
        %306 = vmatmul.mubr.f32.gmra.mxu0 %v239
        %v307 = vpop.f32.mrf.mxu0
        %v308 = vadd.f32 0.0, %v307
        %v309 = vpop.f32.mrf.mxu0
        %v310 = vadd.f32 0.0, %v309
        %311 = vdwg.mxu0
        %v312 = vld [vmem:[%s2] sm:$0x3]
        %vm313 = vcmp.ge.f32.partialorder %v308, 0.0
        %vm314 = vcmp.ge.f32.partialorder %v310, 0.0
        %316 = vset.pattern.permute.xlu0 0
        %317 = vperm.xlu0 %316, %v312
        %v318 = vpop.permute.xlu0 %317
        %v320 = vmul.f32 %v318, %v308
        %v321 = vmul.f32 %v318, %v310
        %v322 = vsel %vm313, %v308, %v320
        %v323 = vsel %vm314, %v310, %v321
        %v324 = vld [vmem:[%s3] sm:$0xff]
        %vm325 = vcmask 15360
        %v327 = vsel %vm325, %v324, 0
        %vm329 = vcmask 1041408
        %v331 = vsel %vm329, %v322, 0
        %v334 = vsel %vm329, %v323, 0
        %336 = vmatprep.subr.mxu0 0.0
        %337 = vmatpush1.msra.mxu0 0.0
        %338 = vmatprep.subr.mxu0 0.0
        %339 = vmatpush1.msra.mxu0 0.0
        %340 = vmatprep.subr.mxu0 0.0
        %341 = vmatpush1.msra.mxu0 0.0
        %342 = vmatprep.subr.mxu0 0.0
        %343 = vmatpush1.msra.mxu0 0.0
        %344 = vmatprep.subr.mxu0 0.0
        %345 = vmatpush1.msra.mxu0 0.0
        %346 = vmatprep.subr.mxu0 0.0
        %347 = vmatpush1.msra.mxu0 0.0
        %348 = vmatprep.subr.mxu0 0.0
        %349 = vmatpush1.msra.mxu0 0.0
        %350 = vmatprep.subr.mxu0 0.0
        %351 = vmatpush1.msra.mxu0 0.0
        %352 = vmatprep.subr.mxu0 0.0
        %353 = vmatpush1.msra.mxu0 0.0
        %354 = vmatprep.subr.mxu0 0.0
        %355 = vmatpush1.msra.mxu0 0.0
        %356 = vmatprep.subr.mxu0 0.0
        %357 = vmatpush1.msra.mxu0 0.0
        %358 = vmatprep.subr.mxu0 0.0
        %359 = vmatpush1.msra.mxu0 0.0
        %360 = vmatprep.subr.mxu0 0.0
        %361 = vmatpush1.msra.mxu0 0.0
        %362 = vmatprep.subr.mxu0 0.0
        %363 = vmatpush1.msra.mxu0 0.0
        %364 = vmatprep.subr.mxu0 0.0
        %365 = vmatpush1.msra.mxu0 0.0
        %366 = vmatprep.subr.mxu0 %v334
        %367 = vmatpush1.msra.mxu0 %v331
        %368 = vmatprep.subr.mxu0 0.0
        %369 = vmatpush2.msra.mxu0 0.0
        %370 = vmatprep.subr.mxu0 0.0
        %371 = vmatpush2.msra.mxu0 0.0
        %372 = vmatprep.subr.mxu0 0.0
        %373 = vmatpush2.msra.mxu0 0.0
        %374 = vmatprep.subr.mxu0 0.0
        %375 = vmatpush2.msra.mxu0 0.0
        %376 = vmatprep.subr.mxu0 0.0
        %377 = vmatpush2.msra.mxu0 0.0
        %378 = vmatprep.subr.mxu0 0.0
        %379 = vmatpush2.msra.mxu0 0.0
        %380 = vmatprep.subr.mxu0 0.0
        %381 = vmatpush2.msra.mxu0 0.0
        %382 = vmatprep.subr.mxu0 0.0
        %383 = vmatpush2.msra.mxu0 0.0
        %384 = vmatprep.subr.mxu0 0.0
        %385 = vmatpush2.msra.mxu0 0.0
        %386 = vmatprep.subr.mxu0 0.0
        %387 = vmatpush2.msra.mxu0 0.0
        %388 = vmatprep.subr.mxu0 0.0
        %389 = vmatpush2.msra.mxu0 0.0
        %390 = vmatprep.subr.mxu0 0.0
        %391 = vmatpush2.msra.mxu0 0.0
        %392 = vmatprep.subr.mxu0 0.0
        %393 = vmatpush2.msra.mxu0 0.0
        %394 = vmatprep.subr.mxu0 0.0
        %395 = vmatpush2.msra.mxu0 0.0
        %396 = vmatprep.subr.mxu0 0.0
        %397 = vmatpush2.msra.mxu0 0.0
        %398 = vmatprep.subr.mxu0 0.0
        %399 = vmatpush2.msra.mxu0 0.0
        %400 = vmatprep.mubr.f32.mxu0 0.0
        %401 = vmatmul.mubr.f32.gmra.mxu0 %v327
        %v402 = vpop.f32.mrf.mxu0
        %v403 = vadd.f32 0.0, %v402
        %v404 = vpop.f32.mrf.mxu0
        %v405 = vadd.f32 0.0, %v404
        %406 = vdwg.mxu0
        %v407 = vxor.u32 %v403, 2147483648
        %v408 = vxor.u32 %v405, 2147483648
        %v409 = vmul.f32 %v407, 1.442695
        %v410 = vpow.pop %v409
        %v411 = vmul.f32 %v408, 1.442695
        %v412 = vpow.pop %v411
        %v413 = vadd.f32 %v410, 1.0
        %v414 = vadd.f32 %v412, 1.0
        %v415 = vrcp.pop %v413
        %v416 = vmul.f32 1.0, %v415
        %v417 = vrcp.pop %v414
        %v418 = vmul.f32 1.0, %v417
        %v419 = vmul.f32 %v234, %v416
        %v420 = vmul.f32 %v235, %v418
        %421 = vst [vmem:[%s231] sm:$0xff] %v419
        %422 = vst [vmem:[%s231 + $0x8] sm:$0xff] %v420
        %s423 = sand.u32 %s134, 1
        %s424 = scalar_lea.sflag [#allocation4], %s423
        %s425 = sand.u32 %s134, 1
        %s426 = smul.addr %s425, 16
        %s427 = scalar_lea.vmem [#allocation5], %s426
        // Predicated region
        $region41: #{tpu_custom_call.1} parent=35 // pred_check
          %p428 = pneg %p144
        $region42: #{tpu_custom_call.1} parent=35 // pred_check_branch
          %430 = sbr.rel (%p428) target = $region44
        $region43: #{tpu_custom_call.1} parent=35 // pred_region
          %s431 = smul.u32 2, %s26
          %s433 = ssub.s32 256, 256
          %434 = vsyncadd %s424, %s433
          %s435 = smul.addr %s25, 2
          %s436 = sadd.s32 %s431, %s435
          %s437 = smul.addr %s436, 128
          %s438 = scalar_lea.hbm %s4, %s437
          %s440 = sshll.u32 %s427, 4
          %s441 = int_to_ptr.vmem [resolvable:$true] %s440
          %443 = dma.vmem_to_hbm [thread:$0]  %s441, 256, %s438, %s424
        $region44: #{tpu_custom_call.1} parent=35 // pred_fallthru
          _
      $region36: #{tpu_custom_call.1} parent=5 // pred_fallthru
        _
      %p444 = scmp.le.s32.totalorder 2, %s16
      // Predicated region
      $region45: #{tpu_custom_call.1} parent=5 // pred_check
        %p445 = pneg %p444
      $region46: #{tpu_custom_call.1} parent=5 // pred_check_branch
        %447 = sbr.rel (%p445) target = $region48
      $region47: #{tpu_custom_call.1} parent=5 // pred_region
        %s448 = ssub.s32 %s16, 2
        // Predicated region
        $region49: #{tpu_custom_call.1} parent=47 // pred_check
          %p449 = pneg %p150
        $region50: #{tpu_custom_call.1} parent=47 // pred_check_branch
          %451 = sbr.rel (%p449) target = $region52
        $region51: #{tpu_custom_call.1} parent=47 // pred_region
          %s452 = sand.u32 %s135, 1
          %s453 = scalar_lea.sflag [#allocation4], %s452
          %s454 = sand.u32 %s135, 1
          %s455 = smul.addr %s454, 16
          %s456 = scalar_lea.vmem [#allocation5], %s455
          %457 = dma.done %s453, 256
        $region52: #{tpu_custom_call.1} parent=47 // pred_fallthru
          _
      $region48: #{tpu_custom_call.1} parent=5 // pred_fallthru
        _
    $region6: #{tpu_custom_call.1} parent=1 // loop_footer
      %s20 = sadd.s32 1, %s16
    $region7: #{tpu_custom_call.1} parent=1 // loop_footer_branch
      %15 = sbr.rel target = $region3
    $region8: #{tpu_custom_call.1} parent=1 // loop_exit
      _
    %458 = vsyncpa [#allocation3], 1
    %s459 = scalar_lea.sflag [#allocation3], 1
    %460 = vsyncpa %s459, 1
    %461 = vsyncpa [#allocation4], 1
    %s462 = scalar_lea.sflag [#allocation4], 1
    %463 = vsyncpa %s462, 1

</llo_original>
